<compile_context>
chip_gen: v7x
topology: tpu7x:2x2x1
jax: 0.10.0
libtpu: 0.0.40
codegen_flags: <defaults>
</compile_context>

<pallas_src>
import functools

import jax
import jax.numpy as jnp
from jax.experimental import pallas as pl
from jax.experimental.pallas import tpu as pltpu


def edge_mlp_kernel(srcT_ref, destT_ref, edgeT_ref,
                    w1s_ref, w1d_ref, w1e_ref, b1_ref,
                    w2_ref, b2_ref,
                    out_ref):
    # Feature-major: tiles are (features, tm_edges); edges on the lane axis.
    # h = W1^T @ cat(src, dest, edge)  ==  W1s^T@src + W1d^T@dest + W1e^T@edge
    h = (jnp.dot(w1s_ref[...], srcT_ref[...], preferred_element_type=jnp.float32)
         + jnp.dot(w1d_ref[...], destT_ref[...], preferred_element_type=jnp.float32)
         + jnp.dot(w1e_ref[...], edgeT_ref[...], preferred_element_type=jnp.float32)
         + b1_ref[...])                                   # (hidden, tm) + (hidden, 1)
    h = jnp.maximum(h, 0.0)                               # ReLU on the f32 accumulator
    y = jnp.dot(w2_ref[...], h.astype(w2_ref.dtype),
                preferred_element_type=jnp.float32) + b2_ref[...]
    out_ref[...] = y.astype(out_ref.dtype)                # (edge_out, tm) lane-dense


@functools.partial(jax.jit, static_argnames=("tm",))
def edge_model_forward(src, dest, edge_attr, w1, b1, w2, b2, *, tm=512):
    """Pallas implementation of EdgeModel.forward (u and batch are unused).

    src, dest:  (E, node_in)   edge_attr: (E, edge_in)
    w1: (edge_in + 2*node_in, hidden)  b1: (1, hidden)   (W stored as (in, out))
    w2: (hidden, edge_out)             b2: (1, edge_out)
    tm: edges per grid step; must be a multiple of 128.
    """
    if tm % 128 != 0:
        raise ValueError("tm must be a multiple of 128 for lane-dense tiling")

    e = src.shape[0]
    node_in = src.shape[1]
    edge_in = edge_attr.shape[1]
    hidden = w1.shape[1]
    edge_out = w2.shape[1]

    # Pad E up to a multiple of tm so every grid block is full (no masked tile).
    e_pad = pl.cdiv(e, tm) * tm

    def to_feature_major(x):                  # (E, F) -> (F, E_pad)
        xt = x.T
        return jnp.pad(xt, ((0, 0), (0, e_pad - e)))

    srcT = to_feature_major(src)
    destT = to_feature_major(dest)
    edgeT = to_feature_major(edge_attr)

    # Split W1 into the row-blocks multiplying src / dest / edge_attr and
    # transpose all weights to (out_features, in_features) for W^T @ X.
    w1s = w1[:node_in].T                      # (hidden, node_in)
    w1d = w1[node_in:2 * node_in].T           # (hidden, node_in)
    w1e = w1[2 * node_in:].T                  # (hidden, edge_in)
    b1c = b1.reshape(hidden, 1)               # (hidden, 1)
    w2t = w2.T                                # (edge_out, hidden)
    b2c = b2.reshape(edge_out, 1)             # (edge_out, 1)

    grid = (e_pad // tm,)
    outT = pl.pallas_call(
        edge_mlp_kernel,
        out_shape=jax.ShapeDtypeStruct((edge_out, e_pad), src.dtype),
        grid_spec=pl.GridSpec(
            grid=grid,
            in_specs=[
                pl.BlockSpec((node_in, tm), lambda i: (0, i)),     # src^T
                pl.BlockSpec((node_in, tm), lambda i: (0, i)),     # dest^T
                pl.BlockSpec((edge_in, tm), lambda i: (0, i)),     # edge_attr^T
                pl.BlockSpec((hidden, node_in), lambda i: (0, 0)),  # W1_src^T
                pl.BlockSpec((hidden, node_in), lambda i: (0, 0)),  # W1_dst^T
                pl.BlockSpec((hidden, edge_in), lambda i: (0, 0)),  # W1_edge^T
                pl.BlockSpec((hidden, 1), lambda i: (0, 0)),         # b1
                pl.BlockSpec((edge_out, hidden), lambda i: (0, 0)),  # W2^T
                pl.BlockSpec((edge_out, 1), lambda i: (0, 0)),       # b2
            ],
            out_specs=pl.BlockSpec((edge_out, tm), lambda i: (0, i)),
        ),
        compiler_params=pltpu.CompilerParams(
            dimension_semantics=("parallel",)),
    )(srcT, destT, edgeT, w1s, w1d, w1e, b1c, w2t, b2c)

    # Drop padding and return edge-major (E, edge_out), matching PyTorch.
    return outT[:, :e].T


def init_linear(key, fan_in, fan_out, dtype=jnp.float32):
    """Deterministic PyTorch-style Linear init; returns W as (in, out)."""
    kw, kb = jax.random.split(key)
    bound = 1.0 / jnp.sqrt(jnp.asarray(fan_in, dtype))
    w = jax.random.uniform(kw, (fan_in, fan_out), dtype, -bound, bound)
    b = jax.random.uniform(kb, (1, fan_out), dtype, -bound, bound)
    return w, b


def reference_forward(src, dest, edge_attr, w1, b1, w2, b2):
    x = jnp.concatenate([src, dest, edge_attr], axis=1)
    h = jnp.maximum(x @ w1 + b1, 0.0)
    return h @ w2 + b2


if __name__ == "__main__":
    # Small shapes consistent with the module's forward signature.
    E = 8            # number of edges
    node_in = 4      # node feature dim
    edge_in = 4      # edge feature dim
    hidden = 32
    edge_out = 4

    key = jax.random.PRNGKey(0)
    k_src, k_dst, k_edge, k_l1, k_l2 = jax.random.split(key, 5)

    src = jax.random.normal(k_src, (E, node_in), jnp.float32)
    dest = jax.random.normal(k_dst, (E, node_in), jnp.float32)
    edge_attr = jax.random.normal(k_edge, (E, edge_in), jnp.float32)
    u = None       # unused by EdgeModel.forward
    batch = None   # unused by EdgeModel.forward

    w1, b1 = init_linear(k_l1, edge_in + 2 * node_in, hidden)
    w2, b2 = init_linear(k_l2, hidden, edge_out)

    out = edge_model_forward(src, dest, edge_attr, w1, b1, w2, b2, tm=512)
    out = jax.block_until_ready(out)

    ref = reference_forward(src, dest, edge_attr, w1, b1, w2, b2)
    if not jnp.allclose(out, ref, atol=1e-5, rtol=1e-5):
        raise AssertionError("Pallas EdgeModel output mismatch vs JAX reference")

    print("KERNEL_OK")
</pallas_src>

<mosaic_0001>
module attributes {stable_mosaic.version = 11 : i64} {
  func.func @edge_mlp_kernel(%arg0: i32, %arg1: memref<4x512xf32, #tpu.memory_space<vmem>>, %arg2: memref<4x512xf32, #tpu.memory_space<vmem>>, %arg3: memref<4x512xf32, #tpu.memory_space<vmem>>, %arg4: memref<32x4xf32, #tpu.memory_space<vmem>>, %arg5: memref<32x4xf32, #tpu.memory_space<vmem>>, %arg6: memref<32x4xf32, #tpu.memory_space<vmem>>, %arg7: memref<32x1xf32, #tpu.memory_space<vmem>>, %arg8: memref<4x32xf32, #tpu.memory_space<vmem>>, %arg9: memref<4x1xf32, #tpu.memory_space<vmem>>, %arg10: memref<4x512xf32, #tpu.memory_space<vmem>>) attributes {dimension_semantics = [#tpu.dimension_semantics<parallel>], iteration_bounds = array<i64: 1>, scalar_prefetch = 0 : i64, scratch_operands = 0 : i64, tpu.core_type = #tpu.core_type<tc>, window_params = [{transform_indices = @transform_0, window_bounds = array<i64: 4, 512>}, {transform_indices = @transform_1, window_bounds = array<i64: 4, 512>}, {transform_indices = @transform_2, window_bounds = array<i64: 4, 512>}, {pipeline_mode = #tpu.pipeline_mode<synchronous>, transform_indices = @transform_3, window_bounds = array<i64: 32, 4>}, {pipeline_mode = #tpu.pipeline_mode<synchronous>, transform_indices = @transform_4, window_bounds = array<i64: 32, 4>}, {pipeline_mode = #tpu.pipeline_mode<synchronous>, transform_indices = @transform_5, window_bounds = array<i64: 32, 4>}, {pipeline_mode = #tpu.pipeline_mode<synchronous>, transform_indices = @transform_6, window_bounds = array<i64: 32, 1>}, {pipeline_mode = #tpu.pipeline_mode<synchronous>, transform_indices = @transform_7, window_bounds = array<i64: 4, 32>}, {pipeline_mode = #tpu.pipeline_mode<synchronous>, transform_indices = @transform_8, window_bounds = array<i64: 4, 1>}, {transform_indices = @transform_9, window_bounds = array<i64: 4, 512>}]} {
    %c0 = arith.constant 0 : index
    %c0_0 = arith.constant 0 : index
    %0 = vector.load %arg4[%c0, %c0_0] : memref<32x4xf32, #tpu.memory_space<vmem>>, vector<32x4xf32>
    %c0_1 = arith.constant 0 : index
    %c0_2 = arith.constant 0 : index
    %1 = vector.load %arg1[%c0_1, %c0_2] : memref<4x512xf32, #tpu.memory_space<vmem>>, vector<4x512xf32>
    %cst = arith.constant dense<0.000000e+00> : vector<32x512xf32>
    %2 = tpu.matmul %0, %1, %cst {dimension_numbers = #tpu.dot_dimension_numbers<[1], [0], [0], [1], [0, 0, 1, 1], [], []>} : vector<32x4xf32>, vector<4x512xf32>, vector<32x512xf32> -> vector<32x512xf32>
    %c0_3 = arith.constant 0 : index
    %c0_4 = arith.constant 0 : index
    %3 = vector.load %arg5[%c0_3, %c0_4] : memref<32x4xf32, #tpu.memory_space<vmem>>, vector<32x4xf32>
    %c0_5 = arith.constant 0 : index
    %c0_6 = arith.constant 0 : index
    %4 = vector.load %arg2[%c0_5, %c0_6] : memref<4x512xf32, #tpu.memory_space<vmem>>, vector<4x512xf32>
    %cst_7 = arith.constant dense<0.000000e+00> : vector<32x512xf32>
    %5 = tpu.matmul %3, %4, %cst_7 {dimension_numbers = #tpu.dot_dimension_numbers<[1], [0], [0], [1], [0, 0, 1, 1], [], []>} : vector<32x4xf32>, vector<4x512xf32>, vector<32x512xf32> -> vector<32x512xf32>
    %6 = arith.addf %2, %5 : vector<32x512xf32>
    %c0_8 = arith.constant 0 : index
    %c0_9 = arith.constant 0 : index
    %7 = vector.load %arg6[%c0_8, %c0_9] : memref<32x4xf32, #tpu.memory_space<vmem>>, vector<32x4xf32>
    %c0_10 = arith.constant 0 : index
    %c0_11 = arith.constant 0 : index
    %8 = vector.load %arg3[%c0_10, %c0_11] : memref<4x512xf32, #tpu.memory_space<vmem>>, vector<4x512xf32>
    %cst_12 = arith.constant dense<0.000000e+00> : vector<32x512xf32>
    %9 = tpu.matmul %7, %8, %cst_12 {dimension_numbers = #tpu.dot_dimension_numbers<[1], [0], [0], [1], [0, 0, 1, 1], [], []>} : vector<32x4xf32>, vector<4x512xf32>, vector<32x512xf32> -> vector<32x512xf32>
    %10 = arith.addf %6, %9 : vector<32x512xf32>
    %c0_13 = arith.constant 0 : index
    %c0_14 = arith.constant 0 : index
    %11 = vector.load %arg7[%c0_13, %c0_14] : memref<32x1xf32, #tpu.memory_space<vmem>>, vector<32x1xf32>
    %12 = vector.broadcast %11 : vector<32x1xf32> to vector<32x512xf32>
    %13 = arith.addf %10, %12 : vector<32x512xf32>
    %cst_15 = arith.constant 0.000000e+00 : f32
    %14 = vector.broadcast %cst_15 : f32 to vector<32x512xf32>
    %15 = arith.maximumf %13, %14 : vector<32x512xf32>
    %c0_16 = arith.constant 0 : index
    %c0_17 = arith.constant 0 : index
    %16 = vector.load %arg8[%c0_16, %c0_17] : memref<4x32xf32, #tpu.memory_space<vmem>>, vector<4x32xf32>
    %cst_18 = arith.constant dense<0.000000e+00> : vector<4x512xf32>
    %17 = tpu.matmul %16, %15, %cst_18 {dimension_numbers = #tpu.dot_dimension_numbers<[1], [0], [0], [1], [0, 0, 1, 1], [], []>} : vector<4x32xf32>, vector<32x512xf32>, vector<4x512xf32> -> vector<4x512xf32>
    %c0_19 = arith.constant 0 : index
    %c0_20 = arith.constant 0 : index
    %18 = vector.load %arg9[%c0_19, %c0_20] : memref<4x1xf32, #tpu.memory_space<vmem>>, vector<4x1xf32>
    %19 = vector.broadcast %18 : vector<4x1xf32> to vector<4x512xf32>
    %20 = arith.addf %17, %19 : vector<4x512xf32>
    %c0_21 = arith.constant 0 : index
    %c0_22 = arith.constant 0 : index
    %21 = vector.load %arg10[%c0_21, %c0_22] : memref<4x512xf32, #tpu.memory_space<vmem>>, vector<4x512xf32>
    tpu.vector_store %arg10[%c0_21, %c0_22], %20 {strides = array<i32>} : memref<4x512xf32, #tpu.memory_space<vmem>>, vector<4x512xf32>,
    return
  }
  func.func @transform_0(%arg0: i32) -> (i32, i32) {
    %c0_i32 = arith.constant 0 : i32
    %c0_i32_0 = arith.constant 0 : i32
    return %c0_i32, %arg0 : i32, i32
  }
  func.func @transform_1(%arg0: i32) -> (i32, i32) {
    %c0_i32 = arith.constant 0 : i32
    %c0_i32_0 = arith.constant 0 : i32
    return %c0_i32, %arg0 : i32, i32
  }
  func.func @transform_2(%arg0: i32) -> (i32, i32) {
    %c0_i32 = arith.constant 0 : i32
    %c0_i32_0 = arith.constant 0 : i32
    return %c0_i32, %arg0 : i32, i32
  }
  func.func @transform_3(%arg0: i32) -> (i32, i32) {
    %c0_i32 = arith.constant 0 : i32
    %c0_i32_0 = arith.constant 0 : i32
    %c0_i32_1 = arith.constant 0 : i32
    return %c0_i32, %c0_i32_0 : i32, i32
  }
  func.func @transform_4(%arg0: i32) -> (i32, i32) {
    %c0_i32 = arith.constant 0 : i32
    %c0_i32_0 = arith.constant 0 : i32
    %c0_i32_1 = arith.constant 0 : i32
    return %c0_i32, %c0_i32_0 : i32, i32
  }
  func.func @transform_5(%arg0: i32) -> (i32, i32) {
    %c0_i32 = arith.constant 0 : i32
    %c0_i32_0 = arith.constant 0 : i32
    %c0_i32_1 = arith.constant 0 : i32
    return %c0_i32, %c0_i32_0 : i32, i32
  }
  func.func @transform_6(%arg0: i32) -> (i32, i32) {
    %c0_i32 = arith.constant 0 : i32
    %c0_i32_0 = arith.constant 0 : i32
    %c0_i32_1 = arith.constant 0 : i32
    return %c0_i32, %c0_i32_0 : i32, i32
  }
  func.func @transform_7(%arg0: i32) -> (i32, i32) {
    %c0_i32 = arith.constant 0 : i32
    %c0_i32_0 = arith.constant 0 : i32
    %c0_i32_1 = arith.constant 0 : i32
    return %c0_i32, %c0_i32_0 : i32, i32
  }
  func.func @transform_8(%arg0: i32) -> (i32, i32) {
    %c0_i32 = arith.constant 0 : i32
    %c0_i32_0 = arith.constant 0 : i32
    %c0_i32_1 = arith.constant 0 : i32
    return %c0_i32, %c0_i32_0 : i32, i32
  }
  func.func @transform_9(%arg0: i32) -> (i32, i32) {
    %c0_i32 = arith.constant 0 : i32
    %c0_i32_0 = arith.constant 0 : i32
    return %c0_i32, %arg0 : i32, i32
  }
}

</mosaic_0001>

<llo_original>
// kernel: edge_model_forward.1
$region0: #{edge_model_forward.1}
  #allocation0 [shape = 'u32[]', space=smem, size = 0x4, offset = 0x4, fixed_abs, tag = 'smem constant byte address 0x4 - core index']
  #allocation1 [shape = 'u32[144,128]{1,0:T(1,128)}', space=vmem, size = 0x12000, scoped, tag = 'internal scratch']
  %s0 = inlined_call_operand.vmem [shape: f32[4,512], index: 0, kind: input, shape index: {}]
  %s1 = inlined_call_operand.vmem [shape: f32[4,512], index: 1, kind: input, shape index: {}]
  %s2 = inlined_call_operand.vmem [shape: f32[4,512], index: 2, kind: input, shape index: {}]
  %s3 = inlined_call_operand.vmem [shape: f32[32,4], index: 3, kind: input, shape index: {}]
  %s4 = inlined_call_operand.vmem [shape: f32[32,4], index: 4, kind: input, shape index: {}]
  %s5 = inlined_call_operand.vmem [shape: f32[32,4], index: 5, kind: input, shape index: {}]
  %s6 = inlined_call_operand.vmem [shape: f32[32,1], index: 6, kind: input, shape index: {}]
  %s7 = inlined_call_operand.vmem [shape: f32[4,32], index: 7, kind: input, shape index: {}]
  %s8 = inlined_call_operand.vmem [shape: f32[4,1], index: 8, kind: input, shape index: {}]
  %s9 = inlined_call_operand.vmem [shape: f32[4,512], index: 9, kind: output, shape index: {}]
  %s10 = sld [smem:[#allocation0]]
  $region46: #{edge_model_forward.1} parent=0
    _
  %s12 = ssub.s32 1, %s10
  %s13 = scalar_select 0, %s12, %s10
  // Predicated region
  $region2: #{edge_model_forward.1} parent=0 // pred_check
    _
  $region3: #{edge_model_forward.1} parent=0 // pred_check_branch
    %15 = sbr.rel (0) target = $region5
  $region4: #{edge_model_forward.1} parent=0 // pred_region
    _
  $region5: #{edge_model_forward.1} parent=0 // pred_fallthru
    _
  // Predicated region
  $region6: #{edge_model_forward.1} parent=0 // pred_check
    _
  $region7: #{edge_model_forward.1} parent=0 // pred_check_branch
    %17 = sbr.rel (0) target = $region9
  $region8: #{edge_model_forward.1} parent=0 // pred_region
    _
  $region9: #{edge_model_forward.1} parent=0 // pred_fallthru
    _
  // Predicated region
  $region10: #{edge_model_forward.1} parent=0 // pred_check
    _
  $region11: #{edge_model_forward.1} parent=0 // pred_check_branch
    %19 = sbr.rel (0) target = $region13
  $region12: #{edge_model_forward.1} parent=0 // pred_region
    _
  $region13: #{edge_model_forward.1} parent=0 // pred_fallthru
    _
  // Predicated region
  $region14: #{edge_model_forward.1} parent=0 // pred_check
    _
  $region15: #{edge_model_forward.1} parent=0 // pred_check_branch
    %21 = sbr.rel (0) target = $region17
  $region16: #{edge_model_forward.1} parent=0 // pred_region
    _
  $region17: #{edge_model_forward.1} parent=0 // pred_fallthru
    _
  // Predicated region
  $region18: #{edge_model_forward.1} parent=0 // pred_check
    _
  $region19: #{edge_model_forward.1} parent=0 // pred_check_branch
    %23 = sbr.rel (0) target = $region21
  $region20: #{edge_model_forward.1} parent=0 // pred_region
    _
  $region21: #{edge_model_forward.1} parent=0 // pred_fallthru
    _
  // Predicated region
  $region22: #{edge_model_forward.1} parent=0 // pred_check
    _
  $region23: #{edge_model_forward.1} parent=0 // pred_check_branch
    %25 = sbr.rel (0) target = $region25
  $region24: #{edge_model_forward.1} parent=0 // pred_region
    _
  $region25: #{edge_model_forward.1} parent=0 // pred_fallthru
    _
  // Predicated region
  $region26: #{edge_model_forward.1} parent=0 // pred_check
    _
  $region27: #{edge_model_forward.1} parent=0 // pred_check_branch
    %27 = sbr.rel (0) target = $region29
  $region28: #{edge_model_forward.1} parent=0 // pred_region
    _
  $region29: #{edge_model_forward.1} parent=0 // pred_fallthru
    _
  // Predicated region
  $region30: #{edge_model_forward.1} parent=0 // pred_check
    _
  $region31: #{edge_model_forward.1} parent=0 // pred_check_branch
    %29 = sbr.rel (0) target = $region33
  $region32: #{edge_model_forward.1} parent=0 // pred_region
    _
  $region33: #{edge_model_forward.1} parent=0 // pred_fallthru
    _
  // Predicated region
  $region34: #{edge_model_forward.1} parent=0 // pred_check
    _
  $region35: #{edge_model_forward.1} parent=0 // pred_check_branch
    %31 = sbr.rel (0) target = $region37
  $region36: #{edge_model_forward.1} parent=0 // pred_region
    _
  $region37: #{edge_model_forward.1} parent=0 // pred_fallthru
    _
  %v32 = vld [vmem:[%s3] sm:$0xff]
  %v33 = vld [vmem:[%s3 + $0x8] sm:$0xff]
  %v34 = vld [vmem:[%s3 + $0x10] sm:$0xff]
  %v35 = vld [vmem:[%s3 + $0x18] sm:$0xff]
  %v36 = vld [vmem:[%s0] sm:$0xff]
  %v37 = vld [vmem:[%s0 + $0x8] sm:$0xff]
  %v38 = vld [vmem:[%s4] sm:$0xff]
  %v39 = vld [vmem:[%s4 + $0x8] sm:$0xff]
  %v40 = vld [vmem:[%s4 + $0x10] sm:$0xff]
  %v41 = vld [vmem:[%s4 + $0x18] sm:$0xff]
  %v42 = vld [vmem:[%s1] sm:$0xff]
  %v43 = vld [vmem:[%s1 + $0x8] sm:$0xff]
  %v46 = vcombine.high %v42, %v42
  %v47 = vcombine.high %v43, %v43
  %vm48 = vcmask 31744
  %v50 = vsel %vm48, %v38, 0
  %v53 = vsel %vm48, %v39, 0
  %v56 = vsel %vm48, %v40, 0
  %v59 = vsel %vm48, %v41, 0
  %vm61 = vcmask 1043456
  %v62 = vsel %vm61, %v42, 0
  %v64 = vsel %vm61, %v46, 0
  %v66 = vsel %vm61, %v43, 0
  %v68 = vsel %vm61, %v47, 0
  %70 = vmatprep.subr.mxu0 %v64
  %71 = vmatpush1.msra.mxu0 %v62
  %72 = vmatprep.subr.mxu0 0.0
  %73 = vmatpush1.msra.mxu0 0.0
  %74 = vmatprep.subr.mxu0 0.0
  %75 = vmatpush1.msra.mxu0 0.0
  %76 = vmatprep.subr.mxu0 0.0
  %77 = vmatpush1.msra.mxu0 0.0
  %78 = vmatprep.subr.mxu0 0.0
  %79 = vmatpush1.msra.mxu0 0.0
  %80 = vmatprep.subr.mxu0 0.0
  %81 = vmatpush1.msra.mxu0 0.0
  %82 = vmatprep.subr.mxu0 0.0
  %83 = vmatpush1.msra.mxu0 0.0
  %84 = vmatprep.subr.mxu0 0.0
  %85 = vmatpush1.msra.mxu0 0.0
  %86 = vmatprep.subr.mxu0 0.0
  %87 = vmatpush1.msra.mxu0 0.0
  %88 = vmatprep.subr.mxu0 0.0
  %89 = vmatpush1.msra.mxu0 0.0
  %90 = vmatprep.subr.mxu0 0.0
  %91 = vmatpush1.msra.mxu0 0.0
  %92 = vmatprep.subr.mxu0 0.0
  %93 = vmatpush1.msra.mxu0 0.0
  %94 = vmatprep.subr.mxu0 0.0
  %95 = vmatpush1.msra.mxu0 0.0
  %96 = vmatprep.subr.mxu0 0.0
  %97 = vmatpush1.msra.mxu0 0.0
  %98 = vmatprep.subr.mxu0 0.0
  %99 = vmatpush1.msra.mxu0 0.0
  %100 = vmatprep.subr.mxu0 0.0
  %101 = vmatpush1.msra.mxu0 0.0
  %102 = vmatprep.subr.mxu0 0.0
  %103 = vmatpush1.msra.mxu0 0.0
  %104 = vmatprep.subr.mxu0 0.0
  %105 = vmatpush1.msra.mxu0 0.0
  %106 = vmatprep.subr.mxu0 0.0
  %107 = vmatpush1.msra.mxu0 0.0
  %108 = vmatprep.subr.mxu0 0.0
  %109 = vmatpush1.msra.mxu0 0.0
  %110 = vmatprep.subr.mxu0 0.0
  %111 = vmatpush1.msra.mxu0 0.0
  %112 = vmatprep.subr.mxu0 0.0
  %113 = vmatpush1.msra.mxu0 0.0
  %114 = vmatprep.subr.mxu0 0.0
  %115 = vmatpush1.msra.mxu0 0.0
  %116 = vmatprep.subr.mxu0 0.0
  %117 = vmatpush1.msra.mxu0 0.0
  %118 = vmatprep.subr.mxu0 0.0
  %119 = vmatpush1.msra.mxu0 0.0
  %120 = vmatprep.subr.mxu0 0.0
  %121 = vmatpush1.msra.mxu0 0.0
  %122 = vmatprep.subr.mxu0 0.0
  %123 = vmatpush1.msra.mxu0 0.0
  %124 = vmatprep.subr.mxu0 0.0
  %125 = vmatpush1.msra.mxu0 0.0
  %126 = vmatprep.subr.mxu0 0.0
  %127 = vmatpush1.msra.mxu0 0.0
  %128 = vmatprep.subr.mxu0 0.0
  %129 = vmatpush1.msra.mxu0 0.0
  %130 = vmatprep.subr.mxu0 0.0
  %131 = vmatpush1.msra.mxu0 0.0
  %132 = vmatprep.subr.mxu0 0.0
  %133 = vmatpush1.msra.mxu0 0.0
  %134 = vmatprep.mubr.f32.mxu0 0.0
  %135 = vmatmul.mubr.f32.gmra.mrb[0].mxu0 %v50
  %v136 = vpop.f32.mrb[0].mxu0
  %v137 = vadd.f32 0.0, %v136
  %v138 = vpop.f32.mrb[0].mxu0
  %v139 = vadd.f32 0.0, %v138
  %140 = vmatprep.mubr.f32.mxu0 0.0
  %141 = vmatmul.mubr.f32.gmra.mrb[0].mxu0 %v53
  %v142 = vpop.f32.mrb[0].mxu0
  %v143 = vadd.f32 0.0, %v142
  %v144 = vpop.f32.mrb[0].mxu0
  %v145 = vadd.f32 0.0, %v144
  %146 = vmatprep.mubr.f32.mxu0 0.0
  %147 = vmatmul.mubr.f32.gmra.mrb[0].mxu0 %v56
  %v148 = vpop.f32.mrb[0].mxu0
  %v149 = vadd.f32 0.0, %v148
  %v150 = vpop.f32.mrb[0].mxu0
  %v151 = vadd.f32 0.0, %v150
  %152 = vmatprep.mubr.f32.mxu0 0.0
  %153 = vmatmul.mubr.f32.gmra.mrb[0].mxu0 %v59
  %v154 = vpop.f32.mrb[0].mxu0
  %v155 = vadd.f32 0.0, %v154
  %v156 = vpop.f32.mrb[0].mxu0
  %v157 = vadd.f32 0.0, %v156
  %158 = vdwg.mxu0
  %159 = vmatprep.subr.mxu0 %v68
  %160 = vmatpush1.msra.mxu0 %v66
  %161 = vmatprep.subr.mxu0 0.0
  %162 = vmatpush1.msra.mxu0 0.0
  %163 = vmatprep.subr.mxu0 0.0
  %164 = vmatpush1.msra.mxu0 0.0
  %165 = vmatprep.subr.mxu0 0.0
  %166 = vmatpush1.msra.mxu0 0.0
  %167 = vmatprep.subr.mxu0 0.0
  %168 = vmatpush1.msra.mxu0 0.0
  %169 = vmatprep.subr.mxu0 0.0
  %170 = vmatpush1.msra.mxu0 0.0
  %171 = vmatprep.subr.mxu0 0.0
  %172 = vmatpush1.msra.mxu0 0.0
  %173 = vmatprep.subr.mxu0 0.0
  %174 = vmatpush1.msra.mxu0 0.0
  %175 = vmatprep.subr.mxu0 0.0
  %176 = vmatpush1.msra.mxu0 0.0
  %177 = vmatprep.subr.mxu0 0.0
  %178 = vmatpush1.msra.mxu0 0.0
  %179 = vmatprep.subr.mxu0 0.0
  %180 = vmatpush1.msra.mxu0 0.0
  %181 = vmatprep.subr.mxu0 0.0
  %182 = vmatpush1.msra.mxu0 0.0
  %183 = vmatprep.subr.mxu0 0.0
  %184 = vmatpush1.msra.mxu0 0.0
  %185 = vmatprep.subr.mxu0 0.0
  %186 = vmatpush1.msra.mxu0 0.0
  %187 = vmatprep.subr.mxu0 0.0
  %188 = vmatpush1.msra.mxu0 0.0
  %189 = vmatprep.subr.mxu0 0.0
  %190 = vmatpush1.msra.mxu0 0.0
  %191 = vmatprep.subr.mxu0 0.0
  %192 = vmatpush1.msra.mxu0 0.0
  %193 = vmatprep.subr.mxu0 0.0
  %194 = vmatpush1.msra.mxu0 0.0
  %195 = vmatprep.subr.mxu0 0.0
  %196 = vmatpush1.msra.mxu0 0.0
  %197 = vmatprep.subr.mxu0 0.0
  %198 = vmatpush1.msra.mxu0 0.0
  %199 = vmatprep.subr.mxu0 0.0
  %200 = vmatpush1.msra.mxu0 0.0
  %201 = vmatprep.subr.mxu0 0.0
  %202 = vmatpush1.msra.mxu0 0.0
  %203 = vmatprep.subr.mxu0 0.0
  %204 = vmatpush1.msra.mxu0 0.0
  %205 = vmatprep.subr.mxu0 0.0
  %206 = vmatpush1.msra.mxu0 0.0
  %207 = vmatprep.subr.mxu0 0.0
  %208 = vmatpush1.msra.mxu0 0.0
  %209 = vmatprep.subr.mxu0 0.0
  %210 = vmatpush1.msra.mxu0 0.0
  %211 = vmatprep.subr.mxu0 0.0
  %212 = vmatpush1.msra.mxu0 0.0
  %213 = vmatprep.subr.mxu0 0.0
  %214 = vmatpush1.msra.mxu0 0.0
  %215 = vmatprep.subr.mxu0 0.0
  %216 = vmatpush1.msra.mxu0 0.0
  %217 = vmatprep.subr.mxu0 0.0
  %218 = vmatpush1.msra.mxu0 0.0
  %219 = vmatprep.subr.mxu0 0.0
  %220 = vmatpush1.msra.mxu0 0.0
  %221 = vmatprep.subr.mxu0 0.0
  %222 = vmatpush1.msra.mxu0 0.0
  %223 = vmatprep.mubr.f32.mxu0 0.0
  %224 = vmatmul.mubr.f32.gmra.mrb[0].mxu0 %v50
  %v225 = vpop.f32.mrb[0].mxu0
  %v226 = vadd.f32 0.0, %v225
  %v227 = vpop.f32.mrb[0].mxu0
  %v228 = vadd.f32 0.0, %v227
  %229 = vmatprep.mubr.f32.mxu0 0.0
  %230 = vmatmul.mubr.f32.gmra.mrb[0].mxu0 %v53
  %v231 = vpop.f32.mrb[0].mxu0
  %v232 = vadd.f32 0.0, %v231
  %v233 = vpop.f32.mrb[0].mxu0
  %v234 = vadd.f32 0.0, %v233
  %235 = vmatprep.mubr.f32.mxu0 0.0
  %236 = vmatmul.mubr.f32.gmra.mrb[0].mxu0 %v56
  %v237 = vpop.f32.mrb[0].mxu0
  %v238 = vadd.f32 0.0, %v237
  %v239 = vpop.f32.mrb[0].mxu0
  %v240 = vadd.f32 0.0, %v239
  %241 = vmatprep.mubr.f32.mxu0 0.0
  %242 = vmatmul.mubr.f32.gmra.mrb[0].mxu0 %v59
  %v243 = vpop.f32.mrb[0].mxu0
  %v244 = vadd.f32 0.0, %v243
  %v245 = vpop.f32.mrb[0].mxu0
  %v246 = vadd.f32 0.0, %v245
  %247 = vdwg.mxu0
  %v250 = vcombine.high %v36, %v36
  %v251 = vcombine.high %v37, %v37
  %v253 = vsel %vm48, %v32, 0
  %v256 = vsel %vm48, %v33, 0
  %v259 = vsel %vm48, %v34, 0
  %v262 = vsel %vm48, %v35, 0
  %v264 = vsel %vm61, %v36, 0
  %v266 = vsel %vm61, %v250, 0
  %v268 = vsel %vm61, %v37, 0
  %v270 = vsel %vm61, %v251, 0
  %272 = vmatprep.subr.mxu0 %v266
  %273 = vmatpush1.msra.mxu0 %v264
  %274 = vmatprep.subr.mxu0 0.0
  %275 = vmatpush1.msra.mxu0 0.0
  %276 = vmatprep.subr.mxu0 0.0
  %277 = vmatpush1.msra.mxu0 0.0
  %278 = vmatprep.subr.mxu0 0.0
  %279 = vmatpush1.msra.mxu0 0.0
  %280 = vmatprep.subr.mxu0 0.0
  %281 = vmatpush1.msra.mxu0 0.0
  %282 = vmatprep.subr.mxu0 0.0
  %283 = vmatpush1.msra.mxu0 0.0
  %284 = vmatprep.subr.mxu0 0.0
  %285 = vmatpush1.msra.mxu0 0.0
  %286 = vmatprep.subr.mxu0 0.0
  %287 = vmatpush1.msra.mxu0 0.0
  %288 = vmatprep.subr.mxu0 0.0
  %289 = vmatpush1.msra.mxu0 0.0
  %290 = vmatprep.subr.mxu0 0.0
  %291 = vmatpush1.msra.mxu0 0.0
  %292 = vmatprep.subr.mxu0 0.0
  %293 = vmatpush1.msra.mxu0 0.0
  %294 = vmatprep.subr.mxu0 0.0
  %295 = vmatpush1.msra.mxu0 0.0
  %296 = vmatprep.subr.mxu0 0.0
  %297 = vmatpush1.msra.mxu0 0.0
  %298 = vmatprep.subr.mxu0 0.0
  %299 = vmatpush1.msra.mxu0 0.0
  %300 = vmatprep.subr.mxu0 0.0
  %301 = vmatpush1.msra.mxu0 0.0
  %302 = vmatprep.subr.mxu0 0.0
  %303 = vmatpush1.msra.mxu0 0.0
  %304 = vmatprep.subr.mxu0 0.0
  %305 = vmatpush1.msra.mxu0 0.0
  %306 = vmatprep.subr.mxu0 0.0
  %307 = vmatpush1.msra.mxu0 0.0
  %308 = vmatprep.subr.mxu0 0.0
  %309 = vmatpush1.msra.mxu0 0.0
  %310 = vmatprep.subr.mxu0 0.0
  %311 = vmatpush1.msra.mxu0 0.0
  %312 = vmatprep.subr.mxu0 0.0
  %313 = vmatpush1.msra.mxu0 0.0
  %314 = vmatprep.subr.mxu0 0.0
  %315 = vmatpush1.msra.mxu0 0.0
  %316 = vmatprep.subr.mxu0 0.0
  %317 = vmatpush1.msra.mxu0 0.0
  %318 = vmatprep.subr.mxu0 0.0
  %319 = vmatpush1.msra.mxu0 0.0
  %320 = vmatprep.subr.mxu0 0.0
  %321 = vmatpush1.msra.mxu0 0.0
  %322 = vmatprep.subr.mxu0 0.0
  %323 = vmatpush1.msra.mxu0 0.0
  %324 = vmatprep.subr.mxu0 0.0
  %325 = vmatpush1.msra.mxu0 0.0
  %326 = vmatprep.subr.mxu0 0.0
  %327 = vmatpush1.msra.mxu0 0.0
  %328 = vmatprep.subr.mxu0 0.0
  %329 = vmatpush1.msra.mxu0 0.0
  %330 = vmatprep.subr.mxu0 0.0
  %331 = vmatpush1.msra.mxu0 0.0
  %332 = vmatprep.subr.mxu0 0.0
  %333 = vmatpush1.msra.mxu0 0.0
  %334 = vmatprep.subr.mxu0 0.0
  %335 = vmatpush1.msra.mxu0 0.0
  %336 = vmatprep.mubr.f32.mxu0 0.0
  %337 = vmatmul.mubr.f32.gmra.mrb[0].mxu0 %v253
  %v338 = vpop.f32.mrb[0].mxu0
  %v339 = vadd.f32 %v137, %v338
  %v340 = vpop.f32.mrb[0].mxu0
  %v341 = vadd.f32 %v139, %v340
  %342 = vmatprep.mubr.f32.mxu0 0.0
  %343 = vmatmul.mubr.f32.gmra.mrb[0].mxu0 %v256
  %v344 = vpop.f32.mrb[0].mxu0
  %v345 = vadd.f32 %v143, %v344
  %v346 = vpop.f32.mrb[0].mxu0
  %v347 = vadd.f32 %v145, %v346
  %348 = vmatprep.mubr.f32.mxu0 0.0
  %349 = vmatmul.mubr.f32.gmra.mrb[0].mxu0 %v259
  %v350 = vpop.f32.mrb[0].mxu0
  %v351 = vadd.f32 %v149, %v350
  %v352 = vpop.f32.mrb[0].mxu0
  %v353 = vadd.f32 %v151, %v352
  %354 = vmatprep.mubr.f32.mxu0 0.0
  %355 = vmatmul.mubr.f32.gmra.mrb[0].mxu0 %v262
  %v356 = vpop.f32.mrb[0].mxu0
  %v357 = vadd.f32 %v155, %v356
  %v358 = vpop.f32.mrb[0].mxu0
  %v359 = vadd.f32 %v157, %v358
  %360 = vdwg.mxu0
  %361 = vmatprep.subr.mxu0 %v270
  %362 = vmatpush1.msra.mxu0 %v268
  %363 = vmatprep.subr.mxu0 0.0
  %364 = vmatpush1.msra.mxu0 0.0
  %365 = vmatprep.subr.mxu0 0.0
  %366 = vmatpush1.msra.mxu0 0.0
  %367 = vmatprep.subr.mxu0 0.0
  %368 = vmatpush1.msra.mxu0 0.0
  %369 = vmatprep.subr.mxu0 0.0
  %370 = vmatpush1.msra.mxu0 0.0
  %371 = vmatprep.subr.mxu0 0.0
  %372 = vmatpush1.msra.mxu0 0.0
  %373 = vmatprep.subr.mxu0 0.0
  %374 = vmatpush1.msra.mxu0 0.0
  %375 = vmatprep.subr.mxu0 0.0
  %376 = vmatpush1.msra.mxu0 0.0
  %377 = vmatprep.subr.mxu0 0.0
  %378 = vmatpush1.msra.mxu0 0.0
  %379 = vmatprep.subr.mxu0 0.0
  %380 = vmatpush1.msra.mxu0 0.0
  %381 = vmatprep.subr.mxu0 0.0
  %382 = vmatpush1.msra.mxu0 0.0
  %383 = vmatprep.subr.mxu0 0.0
  %384 = vmatpush1.msra.mxu0 0.0
  %385 = vmatprep.subr.mxu0 0.0
  %386 = vmatpush1.msra.mxu0 0.0
  %387 = vmatprep.subr.mxu0 0.0
  %388 = vmatpush1.msra.mxu0 0.0
  %389 = vmatprep.subr.mxu0 0.0
  %390 = vmatpush1.msra.mxu0 0.0
  %391 = vmatprep.subr.mxu0 0.0
  %392 = vmatpush1.msra.mxu0 0.0
  %393 = vmatprep.subr.mxu0 0.0
  %394 = vmatpush1.msra.mxu0 0.0
  %395 = vmatprep.subr.mxu0 0.0
  %396 = vmatpush1.msra.mxu0 0.0
  %397 = vmatprep.subr.mxu0 0.0
  %398 = vmatpush1.msra.mxu0 0.0
  %399 = vmatprep.subr.mxu0 0.0
  %400 = vmatpush1.msra.mxu0 0.0
  %401 = vmatprep.subr.mxu0 0.0
  %402 = vmatpush1.msra.mxu0 0.0
  %403 = vmatprep.subr.mxu0 0.0
  %404 = vmatpush1.msra.mxu0 0.0
  %405 = vmatprep.subr.mxu0 0.0
  %406 = vmatpush1.msra.mxu0 0.0
  %407 = vmatprep.subr.mxu0 0.0
  %408 = vmatpush1.msra.mxu0 0.0
  %409 = vmatprep.subr.mxu0 0.0
  %410 = vmatpush1.msra.mxu0 0.0
  %411 = vmatprep.subr.mxu0 0.0
  %412 = vmatpush1.msra.mxu0 0.0
  %413 = vmatprep.subr.mxu0 0.0
  %414 = vmatpush1.msra.mxu0 0.0
  %415 = vmatprep.subr.mxu0 0.0
  %416 = vmatpush1.msra.mxu0 0.0
  %417 = vmatprep.subr.mxu0 0.0
  %418 = vmatpush1.msra.mxu0 0.0
  %419 = vmatprep.subr.mxu0 0.0
  %420 = vmatpush1.msra.mxu0 0.0
  %421 = vmatprep.subr.mxu0 0.0
  %422 = vmatpush1.msra.mxu0 0.0
  %423 = vmatprep.subr.mxu0 0.0
  %424 = vmatpush1.msra.mxu0 0.0
  %425 = vmatprep.mubr.f32.mxu0 0.0
  %426 = vmatmul.mubr.f32.gmra.mrb[0].mxu0 %v253
  %v427 = vpop.f32.mrb[0].mxu0
  %v428 = vadd.f32 %v226, %v427
  %v429 = vpop.f32.mrb[0].mxu0
  %v430 = vadd.f32 %v228, %v429
  %431 = vmatprep.mubr.f32.mxu0 0.0
  %432 = vmatmul.mubr.f32.gmra.mrb[0].mxu0 %v256
  %v433 = vpop.f32.mrb[0].mxu0
  %v434 = vadd.f32 %v232, %v433
  %v435 = vpop.f32.mrb[0].mxu0
  %v436 = vadd.f32 %v234, %v435
  %437 = vmatprep.mubr.f32.mxu0 0.0
  %438 = vmatmul.mubr.f32.gmra.mrb[0].mxu0 %v259
  %v439 = vpop.f32.mrb[0].mxu0
  %v440 = vadd.f32 %v238, %v439
  %v441 = vpop.f32.mrb[0].mxu0
  %v442 = vadd.f32 %v240, %v441
  %443 = vmatprep.mubr.f32.mxu0 0.0
  %444 = vmatmul.mubr.f32.gmra.mrb[0].mxu0 %v262
  %v445 = vpop.f32.mrb[0].mxu0
  %v446 = vadd.f32 %v244, %v445
  %v447 = vpop.f32.mrb[0].mxu0
  %v448 = vadd.f32 %v246, %v447
  %449 = vdwg.mxu0
  %v450 = vld [vmem:[%s5] sm:$0xff]
  %v451 = vld [vmem:[%s5 + $0x8] sm:$0xff]
  %v452 = vld [vmem:[%s5 + $0x10] sm:$0xff]
  %v453 = vld [vmem:[%s5 + $0x18] sm:$0xff]
  %v454 = vld [vmem:[%s2] sm:$0xff]
  %v455 = vld [vmem:[%s2 + $0x8] sm:$0xff]
  %v458 = vcombine.high %v454, %v454
  %v459 = vcombine.high %v455, %v455
  %v461 = vsel %vm48, %v450, 0
  %v464 = vsel %vm48, %v451, 0
  %v467 = vsel %vm48, %v452, 0
  %v470 = vsel %vm48, %v453, 0
  %v472 = vsel %vm61, %v454, 0
  %v474 = vsel %vm61, %v458, 0
  %v476 = vsel %vm61, %v455, 0
  %v478 = vsel %vm61, %v459, 0
  %480 = vmatprep.subr.mxu0 %v474
  %481 = vmatpush1.msra.mxu0 %v472
  %482 = vmatprep.subr.mxu0 0.0
  %483 = vmatpush1.msra.mxu0 0.0
  %484 = vmatprep.subr.mxu0 0.0
  %485 = vmatpush1.msra.mxu0 0.0
  %486 = vmatprep.subr.mxu0 0.0
  %487 = vmatpush1.msra.mxu0 0.0
  %488 = vmatprep.subr.mxu0 0.0
  %489 = vmatpush1.msra.mxu0 0.0
  %490 = vmatprep.subr.mxu0 0.0
  %491 = vmatpush1.msra.mxu0 0.0
  %492 = vmatprep.subr.mxu0 0.0
  %493 = vmatpush1.msra.mxu0 0.0
  %494 = vmatprep.subr.mxu0 0.0
  %495 = vmatpush1.msra.mxu0 0.0
  %496 = vmatprep.subr.mxu0 0.0
  %497 = vmatpush1.msra.mxu0 0.0
  %498 = vmatprep.subr.mxu0 0.0
  %499 = vmatpush1.msra.mxu0 0.0
  %500 = vmatprep.subr.mxu0 0.0
  %501 = vmatpush1.msra.mxu0 0.0
  %502 = vmatprep.subr.mxu0 0.0
  %503 = vmatpush1.msra.mxu0 0.0
  %504 = vmatprep.subr.mxu0 0.0
  %505 = vmatpush1.msra.mxu0 0.0
  %506 = vmatprep.subr.mxu0 0.0
  %507 = vmatpush1.msra.mxu0 0.0
  %508 = vmatprep.subr.mxu0 0.0
  %509 = vmatpush1.msra.mxu0 0.0
  %510 = vmatprep.subr.mxu0 0.0
  %511 = vmatpush1.msra.mxu0 0.0
  %512 = vmatprep.subr.mxu0 0.0
  %513 = vmatpush1.msra.mxu0 0.0
  %514 = vmatprep.subr.mxu0 0.0
  %515 = vmatpush1.msra.mxu0 0.0
  %516 = vmatprep.subr.mxu0 0.0
  %517 = vmatpush1.msra.mxu0 0.0
  %518 = vmatprep.subr.mxu0 0.0
  %519 = vmatpush1.msra.mxu0 0.0
  %520 = vmatprep.subr.mxu0 0.0
  %521 = vmatpush1.msra.mxu0 0.0
  %522 = vmatprep.subr.mxu0 0.0
  %523 = vmatpush1.msra.mxu0 0.0
  %524 = vmatprep.subr.mxu0 0.0
  %525 = vmatpush1.msra.mxu0 0.0
  %526 = vmatprep.subr.mxu0 0.0
  %527 = vmatpush1.msra.mxu0 0.0
  %528 = vmatprep.subr.mxu0 0.0
  %529 = vmatpush1.msra.mxu0 0.0
  %530 = vmatprep.subr.mxu0 0.0
  %531 = vmatpush1.msra.mxu0 0.0
  %532 = vmatprep.subr.mxu0 0.0
  %533 = vmatpush1.msra.mxu0 0.0
  %534 = vmatprep.subr.mxu0 0.0
  %535 = vmatpush1.msra.mxu0 0.0
  %536 = vmatprep.subr.mxu0 0.0
  %537 = vmatpush1.msra.mxu0 0.0
  %538 = vmatprep.subr.mxu0 0.0
  %539 = vmatpush1.msra.mxu0 0.0
  %540 = vmatprep.subr.mxu0 0.0
  %541 = vmatpush1.msra.mxu0 0.0
  %542 = vmatprep.subr.mxu0 0.0
  %543 = vmatpush1.msra.mxu0 0.0
  %544 = vmatprep.mubr.f32.mxu0 0.0
  %545 = vmatmul.mubr.f32.gmra.mrb[0].mxu0 %v461
  %v546 = vpop.f32.mrb[0].mxu0
  %v547 = vadd.f32 0.0, %v546
  %v548 = vpop.f32.mrb[0].mxu0
  %v549 = vadd.f32 0.0, %v548
  %550 = vmatprep.mubr.f32.mxu0 0.0
  %551 = vmatmul.mubr.f32.gmra.mrb[0].mxu0 %v464
  %v552 = vpop.f32.mrb[0].mxu0
  %v553 = vadd.f32 0.0, %v552
  %v554 = vpop.f32.mrb[0].mxu0
  %v555 = vadd.f32 0.0, %v554
  %556 = vmatprep.mubr.f32.mxu0 0.0
  %557 = vmatmul.mubr.f32.gmra.mrb[0].mxu0 %v467
  %v558 = vpop.f32.mrb[0].mxu0
  %v559 = vadd.f32 0.0, %v558
  %v560 = vpop.f32.mrb[0].mxu0
  %v561 = vadd.f32 0.0, %v560
  %562 = vmatprep.mubr.f32.mxu0 0.0
  %563 = vmatmul.mubr.f32.gmra.mrb[0].mxu0 %v470
  %v564 = vpop.f32.mrb[0].mxu0
  %v565 = vadd.f32 0.0, %v564
  %v566 = vpop.f32.mrb[0].mxu0
  %v567 = vadd.f32 0.0, %v566
  %568 = vdwg.mxu0
  %569 = vmatprep.subr.mxu0 %v478
  %570 = vmatpush1.msra.mxu0 %v476
  %571 = vmatprep.subr.mxu0 0.0
  %572 = vmatpush1.msra.mxu0 0.0
  %573 = vmatprep.subr.mxu0 0.0
  %574 = vmatpush1.msra.mxu0 0.0
  %575 = vmatprep.subr.mxu0 0.0
  %576 = vmatpush1.msra.mxu0 0.0
  %577 = vmatprep.subr.mxu0 0.0
  %578 = vmatpush1.msra.mxu0 0.0
  %579 = vmatprep.subr.mxu0 0.0
  %580 = vmatpush1.msra.mxu0 0.0
  %581 = vmatprep.subr.mxu0 0.0
  %582 = vmatpush1.msra.mxu0 0.0
  %583 = vmatprep.subr.mxu0 0.0
  %584 = vmatpush1.msra.mxu0 0.0
  %585 = vmatprep.subr.mxu0 0.0
  %586 = vmatpush1.msra.mxu0 0.0
  %587 = vmatprep.subr.mxu0 0.0
  %588 = vmatpush1.msra.mxu0 0.0
  %589 = vmatprep.subr.mxu0 0.0
  %590 = vmatpush1.msra.mxu0 0.0
  %591 = vmatprep.subr.mxu0 0.0
  %592 = vmatpush1.msra.mxu0 0.0
  %593 = vmatprep.subr.mxu0 0.0
  %594 = vmatpush1.msra.mxu0 0.0
  %595 = vmatprep.subr.mxu0 0.0
  %596 = vmatpush1.msra.mxu0 0.0
  %597 = vmatprep.subr.mxu0 0.0
  %598 = vmatpush1.msra.mxu0 0.0
  %599 = vmatprep.subr.mxu0 0.0
  %600 = vmatpush1.msra.mxu0 0.0
  %601 = vmatprep.subr.mxu0 0.0
  %602 = vmatpush1.msra.mxu0 0.0
  %603 = vmatprep.subr.mxu0 0.0
  %604 = vmatpush1.msra.mxu0 0.0
  %605 = vmatprep.subr.mxu0 0.0
  %606 = vmatpush1.msra.mxu0 0.0
  %607 = vmatprep.subr.mxu0 0.0
  %608 = vmatpush1.msra.mxu0 0.0
  %609 = vmatprep.subr.mxu0 0.0
  %610 = vmatpush1.msra.mxu0 0.0
  %611 = vmatprep.subr.mxu0 0.0
  %612 = vmatpush1.msra.mxu0 0.0
  %613 = vmatprep.subr.mxu0 0.0
  %614 = vmatpush1.msra.mxu0 0.0
  %615 = vmatprep.subr.mxu0 0.0
  %616 = vmatpush1.msra.mxu0 0.0
  %617 = vmatprep.subr.mxu0 0.0
  %618 = vmatpush1.msra.mxu0 0.0
  %619 = vmatprep.subr.mxu0 0.0
  %620 = vmatpush1.msra.mxu0 0.0
  %621 = vmatprep.subr.mxu0 0.0
  %622 = vmatpush1.msra.mxu0 0.0
  %623 = vmatprep.subr.mxu0 0.0
  %624 = vmatpush1.msra.mxu0 0.0
  %625 = vmatprep.subr.mxu0 0.0
  %626 = vmatpush1.msra.mxu0 0.0
  %627 = vmatprep.subr.mxu0 0.0
  %628 = vmatpush1.msra.mxu0 0.0
  %629 = vmatprep.subr.mxu0 0.0
  %630 = vmatpush1.msra.mxu0 0.0
  %631 = vmatprep.subr.mxu0 0.0
  %632 = vmatpush1.msra.mxu0 0.0
  %633 = vmatprep.mubr.f32.mxu0 0.0
  %634 = vmatmul.mubr.f32.gmra.mrb[0].mxu0 %v461
  %v635 = vpop.f32.mrb[0].mxu0
  %v636 = vadd.f32 0.0, %v635
  %v637 = vpop.f32.mrb[0].mxu0
  %v638 = vadd.f32 0.0, %v637
  %639 = vmatprep.mubr.f32.mxu0 0.0
  %640 = vmatmul.mubr.f32.gmra.mrb[0].mxu0 %v464
  %v641 = vpop.f32.mrb[0].mxu0
  %v642 = vadd.f32 0.0, %v641
  %v643 = vpop.f32.mrb[0].mxu0
  %v644 = vadd.f32 0.0, %v643
  %645 = vmatprep.mubr.f32.mxu0 0.0
  %646 = vmatmul.mubr.f32.gmra.mrb[0].mxu0 %v467
  %v647 = vpop.f32.mrb[0].mxu0
  %v648 = vadd.f32 0.0, %v647
  %v649 = vpop.f32.mrb[0].mxu0
  %v650 = vadd.f32 0.0, %v649
  %651 = vmatprep.mubr.f32.mxu0 0.0
  %652 = vmatmul.mubr.f32.gmra.mrb[0].mxu0 %v470
  %v653 = vpop.f32.mrb[0].mxu0
  %v654 = vadd.f32 0.0, %v653
  %v655 = vpop.f32.mrb[0].mxu0
  %v656 = vadd.f32 0.0, %v655
  %657 = vdwg.mxu0
  %v658 = vadd.f32 %v339, %v547
  %v659 = vadd.f32 %v341, %v549
  %v660 = vadd.f32 %v428, %v636
  %v661 = vadd.f32 %v430, %v638
  %v662 = vadd.f32 %v345, %v553
  %v663 = vadd.f32 %v347, %v555
  %v664 = vadd.f32 %v434, %v642
  %v665 = vadd.f32 %v436, %v644
  %v666 = vadd.f32 %v351, %v559
  %v667 = vadd.f32 %v353, %v561
  %v668 = vadd.f32 %v440, %v648
  %v669 = vadd.f32 %v442, %v650
  %v670 = vadd.f32 %v357, %v565
  %v671 = vadd.f32 %v359, %v567
  %v672 = vadd.f32 %v446, %v654
  %v673 = vadd.f32 %v448, %v656
  %v674 = vld [vmem:[%s6] sm:$0xff]
  %v675 = vld [vmem:[%s6 + $0x8] sm:$0xff]
  %v676 = vld [vmem:[%s6 + $0x10] sm:$0xff]
  %v677 = vld [vmem:[%s6 + $0x18] sm:$0xff]
  %679 = vset.pattern.permute.xlu0 0
  %680 = vperm.xlu0 %679, %v674
  %v681 = vpop.permute.xlu0 %680
  %684 = vset.pattern.permute.xlu0 0
  %685 = vperm.xlu0 %684, %v675
  %v686 = vpop.permute.xlu0 %685
  %689 = vset.pattern.permute.xlu0 0
  %690 = vperm.xlu0 %689, %v676
  %v691 = vpop.permute.xlu0 %690
  %694 = vset.pattern.permute.xlu0 0
  %695 = vperm.xlu0 %694, %v677
  %v696 = vpop.permute.xlu0 %695
  %v698 = vadd.f32 %v658, %v681
  %v699 = vadd.f32 %v659, %v681
  %v700 = vadd.f32 %v660, %v681
  %v701 = vadd.f32 %v661, %v681
  %v702 = vadd.f32 %v662, %v686
  %v703 = vadd.f32 %v663, %v686
  %v704 = vadd.f32 %v664, %v686
  %v705 = vadd.f32 %v665, %v686
  %v706 = vadd.f32 %v666, %v691
  %v707 = vadd.f32 %v667, %v691
  %v708 = vadd.f32 %v668, %v691
  %v709 = vadd.f32 %v669, %v691
  %v710 = vadd.f32 %v670, %v696
  %v711 = vadd.f32 %v671, %v696
  %v712 = vadd.f32 %v672, %v696
  %v713 = vadd.f32 %v673, %v696
  %v714 = vmax.f32 %v698, 0.0
  %v715 = vmax.f32 %v699, 0.0
  %v716 = vmax.f32 %v700, 0.0
  %v717 = vmax.f32 %v701, 0.0
  %v718 = vmax.f32 %v702, 0.0
  %v719 = vmax.f32 %v703, 0.0
  %v720 = vmax.f32 %v704, 0.0
  %v721 = vmax.f32 %v705, 0.0
  %v722 = vmax.f32 %v706, 0.0
  %v723 = vmax.f32 %v707, 0.0
  %v724 = vmax.f32 %v708, 0.0
  %v725 = vmax.f32 %v709, 0.0
  %v726 = vmax.f32 %v710, 0.0
  %v727 = vmax.f32 %v711, 0.0
  %v728 = vmax.f32 %v712, 0.0
  %v729 = vmax.f32 %v713, 0.0
  %v730 = vld [vmem:[%s7] sm:$0xf]
  %v731 = vld [vmem:[%s8] sm:$0xf]
  %733 = vset.pattern.permute.xlu0 0
  %734 = vperm.xlu0 %733, %v731
  %v735 = vpop.permute.xlu0 %734
  %vm737 = vcmask 261120
  %v739 = vsel %vm737, %v730, 0
  %741 = vmatprep.subr.mxu0 %v715
  %742 = vmatpush1.msra.mxu0 %v714
  %743 = vmatprep.subr.mxu0 %v719
  %744 = vmatpush1.msra.mxu0 %v718
  %745 = vmatprep.subr.mxu0 %v723
  %746 = vmatpush1.msra.mxu0 %v722
  %747 = vmatprep.subr.mxu0 %v727
  %748 = vmatpush1.msra.mxu0 %v726
  %749 = vmatprep.subr.mxu0 0.0
  %750 = vmatpush1.msra.mxu0 0.0
  %751 = vmatprep.subr.mxu0 0.0
  %752 = vmatpush1.msra.mxu0 0.0
  %753 = vmatprep.subr.mxu0 0.0
  %754 = vmatpush1.msra.mxu0 0.0
  %755 = vmatprep.subr.mxu0 0.0
  %756 = vmatpush1.msra.mxu0 0.0
  %757 = vmatprep.subr.mxu0 0.0
  %758 = vmatpush1.msra.mxu0 0.0
  %759 = vmatprep.subr.mxu0 0.0
  %760 = vmatpush1.msra.mxu0 0.0
  %761 = vmatprep.subr.mxu0 0.0
  %762 = vmatpush1.msra.mxu0 0.0
  %763 = vmatprep.subr.mxu0 0.0
  %764 = vmatpush1.msra.mxu0 0.0
  %765 = vmatprep.subr.mxu0 0.0
  %766 = vmatpush1.msra.mxu0 0.0
  %767 = vmatprep.subr.mxu0 0.0
  %768 = vmatpush1.msra.mxu0 0.0
  %769 = vmatprep.subr.mxu0 0.0
  %770 = vmatpush1.msra.mxu0 0.0
  %771 = vmatprep.subr.mxu0 0.0
  %772 = vmatpush1.msra.mxu0 0.0
  %773 = vmatprep.subr.mxu0 0.0
  %774 = vmatpush1.msra.mxu0 0.0
  %775 = vmatprep.subr.mxu0 0.0
  %776 = vmatpush1.msra.mxu0 0.0
  %777 = vmatprep.subr.mxu0 0.0
  %778 = vmatpush1.msra.mxu0 0.0
  %779 = vmatprep.subr.mxu0 0.0
  %780 = vmatpush1.msra.mxu0 0.0
  %781 = vmatprep.subr.mxu0 0.0
  %782 = vmatpush1.msra.mxu0 0.0
  %783 = vmatprep.subr.mxu0 0.0
  %784 = vmatpush1.msra.mxu0 0.0
  %785 = vmatprep.subr.mxu0 0.0
  %786 = vmatpush1.msra.mxu0 0.0
  %787 = vmatprep.subr.mxu0 0.0
  %788 = vmatpush1.msra.mxu0 0.0
  %789 = vmatprep.subr.mxu0 0.0
  %790 = vmatpush1.msra.mxu0 0.0
  %791 = vmatprep.subr.mxu0 0.0
  %792 = vmatpush1.msra.mxu0 0.0
  %793 = vmatprep.subr.mxu0 0.0
  %794 = vmatpush1.msra.mxu0 0.0
  %795 = vmatprep.subr.mxu0 0.0
  %796 = vmatpush1.msra.mxu0 0.0
  %797 = vmatprep.subr.mxu0 0.0
  %798 = vmatpush1.msra.mxu0 0.0
  %799 = vmatprep.subr.mxu0 0.0
  %800 = vmatpush1.msra.mxu0 0.0
  %801 = vmatprep.subr.mxu0 0.0
  %802 = vmatpush1.msra.mxu0 0.0
  %803 = vmatprep.subr.mxu0 0.0
  %804 = vmatpush1.msra.mxu0 0.0
  %805 = vmatprep.mubr.f32.mxu0 0.0
  %806 = vmatmul.mubr.f32.gmra.mrb[0].mxu0 %v739
  %v807 = vpop.f32.mrb[0].mxu0
  %v808 = vadd.f32 %v735, %v807
  %v809 = vpop.f32.mrb[0].mxu0
  %v810 = vadd.f32 %v735, %v809
  %811 = vdwg.mxu0
  %812 = vmatprep.subr.mxu0 %v717
  %813 = vmatpush1.msra.mxu0 %v716
  %814 = vmatprep.subr.mxu0 %v721
  %815 = vmatpush1.msra.mxu0 %v720
  %816 = vmatprep.subr.mxu0 %v725
  %817 = vmatpush1.msra.mxu0 %v724
  %818 = vmatprep.subr.mxu0 %v729
  %819 = vmatpush1.msra.mxu0 %v728
  %820 = vmatprep.subr.mxu0 0.0
  %821 = vmatpush1.msra.mxu0 0.0
  %822 = vmatprep.subr.mxu0 0.0
  %823 = vmatpush1.msra.mxu0 0.0
  %824 = vmatprep.subr.mxu0 0.0
  %825 = vmatpush1.msra.mxu0 0.0
  %826 = vmatprep.subr.mxu0 0.0
  %827 = vmatpush1.msra.mxu0 0.0
  %828 = vmatprep.subr.mxu0 0.0
  %829 = vmatpush1.msra.mxu0 0.0
  %830 = vmatprep.subr.mxu0 0.0
  %831 = vmatpush1.msra.mxu0 0.0
  %832 = vmatprep.subr.mxu0 0.0
  %833 = vmatpush1.msra.mxu0 0.0
  %834 = vmatprep.subr.mxu0 0.0
  %835 = vmatpush1.msra.mxu0 0.0
  %836 = vmatprep.subr.mxu0 0.0
  %837 = vmatpush1.msra.mxu0 0.0
  %838 = vmatprep.subr.mxu0 0.0
  %839 = vmatpush1.msra.mxu0 0.0
  %840 = vmatprep.subr.mxu0 0.0
  %841 = vmatpush1.msra.mxu0 0.0
  %842 = vmatprep.subr.mxu0 0.0
  %843 = vmatpush1.msra.mxu0 0.0
  %844 = vmatprep.subr.mxu0 0.0
  %845 = vmatpush1.msra.mxu0 0.0
  %846 = vmatprep.subr.mxu0 0.0
  %847 = vmatpush1.msra.mxu0 0.0
  %848 = vmatprep.subr.mxu0 0.0
  %849 = vmatpush1.msra.mxu0 0.0
  %850 = vmatprep.subr.mxu0 0.0
  %851 = vmatpush1.msra.mxu0 0.0
  %852 = vmatprep.subr.mxu0 0.0
  %853 = vmatpush1.msra.mxu0 0.0
  %854 = vmatprep.subr.mxu0 0.0
  %855 = vmatpush1.msra.mxu0 0.0
  %856 = vmatprep.subr.mxu0 0.0
  %857 = vmatpush1.msra.mxu0 0.0
  %858 = vmatprep.subr.mxu0 0.0
  %859 = vmatpush1.msra.mxu0 0.0
  %860 = vmatprep.subr.mxu0 0.0
  %861 = vmatpush1.msra.mxu0 0.0
  %862 = vmatprep.subr.mxu0 0.0
  %863 = vmatpush1.msra.mxu0 0.0
  %864 = vmatprep.subr.mxu0 0.0
  %865 = vmatpush1.msra.mxu0 0.0
  %866 = vmatprep.subr.mxu0 0.0
  %867 = vmatpush1.msra.mxu0 0.0
  %868 = vmatprep.subr.mxu0 0.0
  %869 = vmatpush1.msra.mxu0 0.0
  %870 = vmatprep.subr.mxu0 0.0
  %871 = vmatpush1.msra.mxu0 0.0
  %872 = vmatprep.subr.mxu0 0.0
  %873 = vmatpush1.msra.mxu0 0.0
  %874 = vmatprep.subr.mxu0 0.0
  %875 = vmatpush1.msra.mxu0 0.0
  %876 = vmatprep.mubr.f32.mxu0 0.0
  %877 = vmatmul.mubr.f32.gmra.mrb[0].mxu0 %v739
  %v878 = vpop.f32.mrb[0].mxu0
  %v879 = vadd.f32 %v735, %v878
  %v880 = vpop.f32.mrb[0].mxu0
  %v881 = vadd.f32 %v735, %v880
  %882 = vdwg.mxu0
  %v887 = vcombine.low %v808, %v810
  %v888 = vcombine.low %v879, %v881
  %891 = vst [vmem:[%s9] sm:$0xff] %v887
  %892 = vst [vmem:[%s9 + $0x8] sm:$0xff] %v888
  // Predicated region
  $region38: #{edge_model_forward.1} parent=0 // pred_check
    _
  $region39: #{edge_model_forward.1} parent=0 // pred_check_branch
    %894 = sbr.rel (0) target = $region41
  $region40: #{edge_model_forward.1} parent=0 // pred_region
    _
  $region41: #{edge_model_forward.1} parent=0 // pred_fallthru
    _
  // Predicated region
  $region42: #{edge_model_forward.1} parent=0 // pred_check
    _
  $region43: #{edge_model_forward.1} parent=0 // pred_check_branch
    %896 = sbr.rel (0) target = $region45
  $region44: #{edge_model_forward.1} parent=0 // pred_region
    _
  $region45: #{edge_model_forward.1} parent=0 // pred_fallthru
    _

</llo_original>
